<compile_context>
chip_gen: v5e
topology: v5e:2x2
jax: 0.10.0
libtpu: 0.0.40
codegen_flags: <defaults>
</compile_context>

<pallas_src>
import functools

import jax
import jax.numpy as jnp
from jax.experimental import pallas as pl
from jax.experimental.pallas import tpu as pltpu


def _se_kernel(x_ref, w1t_ref, w2t_ref, o_ref, *, inv_hw):
    # x_ref/o_ref : (bb, HW, C)    w1t_ref : (C, Cr)    w2t_ref : (Cr, C)
    x = x_ref[...]

    # Squeeze: global average pool over spatial.  Sum over the sublane axis
    # (VPU adds), accumulate in f32 regardless of activation dtype, scale by 1/(H*W).
    y = jnp.sum(x.astype(jnp.float32), axis=1) * inv_hw                  # (bb, C)

    # Excitation: tiny FC -> ReLU -> FC -> Sigmoid, all in f32.
    h = jnp.dot(y, w1t_ref[...].astype(jnp.float32),
                preferred_element_type=jnp.float32)                      # (bb, Cr)
    h = jnp.maximum(h, 0.0)
    s = jnp.dot(h, w2t_ref[...].astype(jnp.float32),
                preferred_element_type=jnp.float32)                      # (bb, C)
    s = jax.nn.sigmoid(s)

    # Scale: sublane-broadcast of the lane-resident gate, in the activation dtype.
    o_ref[...] = (x * s[:, None, :].astype(x.dtype)).astype(o_ref.dtype)


def _pick_batch_block(b, per_batch_bytes, target_bytes=4 << 20):
    """Largest divisor of b whose x-block stays under target_bytes (always >= 1)."""
    bb = 1
    for d in range(1, b + 1):
        if b % d == 0 and d * per_batch_bytes <= target_bytes:
            bb = d
    return bb


def se_layer(x, w1, w2):
    """x: (B, C, H, W).  w1: (C//r, C), w2: (C, C//r) (PyTorch Linear layout)."""
    b, c, h, w = x.shape
    hw = h * w

    # Channels-last for the kernel: (B, HW, C).
    x3 = jnp.transpose(x.reshape(b, c, hw), (0, 2, 1))
    w1t = w1.T  # (C, Cr)
    w2t = w2.T  # (Cr, C)

    per_batch_bytes = hw * c * x.dtype.itemsize
    bb = _pick_batch_block(b, per_batch_bytes)
    block_bytes = bb * per_batch_bytes
    w_bytes = (w1t.size + w2t.size) * w1t.dtype.itemsize
    # Budget: double-buffered x in + double-buffered x out + weights + headroom.
    # Floor at 32 MiB, cap at 64 MiB (v7x physical VMEM).
    vmem_limit = int(min(64 << 20,
                         max(32 << 20, 4 * block_bytes + 4 * w_bytes + (4 << 20))))

    kernel = functools.partial(_se_kernel, inv_hw=1.0 / float(hw))

    out3 = pl.pallas_call(
        kernel,
        out_shape=jax.ShapeDtypeStruct((b, hw, c), x.dtype),
        grid=(b // bb,),
        in_specs=[
            pl.BlockSpec((bb, hw, c), lambda i: (i, 0, 0)),
            # Constant index_map -> weights DMA'd once, VMEM-resident across steps.
            pl.BlockSpec(w1t.shape, lambda i: (0, 0)),
            pl.BlockSpec(w2t.shape, lambda i: (0, 0)),
        ],
        out_specs=pl.BlockSpec((bb, hw, c), lambda i: (i, 0, 0)),
        compiler_params=pltpu.CompilerParams(
            dimension_semantics=("parallel",),   # shard batch across v7x's 2 TCs
            vmem_limit_bytes=vmem_limit,
        ),
    )(x3, w1t, w2t)

    return jnp.transpose(out3, (0, 2, 1)).reshape(b, c, h, w)


def se_layer_ref(x, w1, w2):
    """Pure-JAX reference mirroring the PyTorch module."""
    y = jnp.mean(x, axis=(2, 3))                 # (B, C)
    y = jnp.maximum(y @ w1.T, 0.0)               # (B, C//r)
    y = jax.nn.sigmoid(y @ w2.T)                 # (B, C)
    return x * y[:, :, None, None]


if __name__ == "__main__":
    # SELayer(channel=32, reduction=16) -> hidden = 2
    B, C, H, W = 2, 32, 8, 8
    REDUCTION = 16
    CR = C // REDUCTION

    key = jax.random.PRNGKey(0)
    kx, k1, k2 = jax.random.split(key, 3)

    x = jax.random.normal(kx, (B, C, H, W), dtype=jnp.float32)
    # PyTorch Linear stores (out_features, in_features)
    w1 = jax.random.normal(k1, (CR, C), dtype=jnp.float32) * 0.1   # Linear(C, C//r)
    w2 = jax.random.normal(k2, (C, CR), dtype=jnp.float32) * 0.1   # Linear(C//r, C)

    out = se_layer(x, w1, w2)
    out = jax.block_until_ready(out)

    ref = se_layer_ref(x, w1, w2)
    assert out.shape == (B, C, H, W)
    assert jnp.allclose(out, ref, atol=1e-5, rtol=1e-5), "mismatch vs reference"

    print("KERNEL_OK")
</pallas_src>

<mosaic_0001>
module attributes {stable_mosaic.version = 11 : i64} {
  func.func @_se_kernel(%arg0: i32, %arg1: memref<2x64x32xf32, #tpu.memory_space<vmem>>, %arg2: memref<32x2xf32, #tpu.memory_space<vmem>>, %arg3: memref<2x32xf32, #tpu.memory_space<vmem>>, %arg4: memref<2x64x32xf32, #tpu.memory_space<vmem>>) attributes {dimension_semantics = [#tpu.dimension_semantics<parallel>], iteration_bounds = array<i64: 1>, scalar_prefetch = 0 : i64, scratch_operands = 0 : i64, tpu.core_type = #tpu.core_type<tc>, window_params = [{transform_indices = @transform_0, window_bounds = array<i64: 2, 64, 32>}, {pipeline_mode = #tpu.pipeline_mode<synchronous>, transform_indices = @transform_1, window_bounds = array<i64: 32, 2>}, {pipeline_mode = #tpu.pipeline_mode<synchronous>, transform_indices = @transform_2, window_bounds = array<i64: 2, 32>}, {transform_indices = @transform_3, window_bounds = array<i64: 2, 64, 32>}]} {
    %c0 = arith.constant 0 : index
    %c0_0 = arith.constant 0 : index
    %c0_1 = arith.constant 0 : index
    %0 = vector.load %arg1[%c0, %c0_0, %c0_1] : memref<2x64x32xf32, #tpu.memory_space<vmem>>, vector<2x64x32xf32>
    %cst = arith.constant dense<0.000000e+00> : vector<2x32xf32>
    %1 = vector.multi_reduction <add>, %0, %cst [1] : vector<2x64x32xf32> to vector<2x32xf32>
    %cst_2 = arith.constant 1.562500e-02 : f32
    %2 = vector.broadcast %cst_2 : f32 to vector<2x32xf32>
    %3 = arith.mulf %1, %2 : vector<2x32xf32>
    %c0_3 = arith.constant 0 : index
    %c0_4 = arith.constant 0 : index
    %4 = vector.load %arg2[%c0_3, %c0_4] : memref<32x2xf32, #tpu.memory_space<vmem>>, vector<32x2xf32>
    %cst_5 = arith.constant dense<0.000000e+00> : vector<2x2xf32>
    %5 = tpu.matmul %3, %4, %cst_5 {dimension_numbers = #tpu.dot_dimension_numbers<[1], [0], [0], [1], [0, 0, 1, 1], [], []>} : vector<2x32xf32>, vector<32x2xf32>, vector<2x2xf32> -> vector<2x2xf32>
    %cst_6 = arith.constant 0.000000e+00 : f32
    %6 = vector.broadcast %cst_6 : f32 to vector<2x2xf32>
    %7 = arith.maximumf %5, %6 : vector<2x2xf32>
    %c0_7 = arith.constant 0 : index
    %c0_8 = arith.constant 0 : index
    %8 = vector.load %arg3[%c0_7, %c0_8] : memref<2x32xf32, #tpu.memory_space<vmem>>, vector<2x32xf32>
    %cst_9 = arith.constant dense<0.000000e+00> : vector<2x32xf32>
    %9 = tpu.matmul %7, %8, %cst_9 {dimension_numbers = #tpu.dot_dimension_numbers<[1], [0], [0], [1], [0, 0, 1, 1], [], []>} : vector<2x2xf32>, vector<2x32xf32>, vector<2x32xf32> -> vector<2x32xf32>
    %10 = arith.negf %9 : vector<2x32xf32>
    %11 = math.exp %10 : vector<2x32xf32>
    %cst_10 = arith.constant 1.000000e+00 : f32
    %12 = vector.broadcast %cst_10 : f32 to vector<2x32xf32>
    %13 = arith.addf %12, %11 : vector<2x32xf32>
    %14 = arith.divf %12, %13 : vector<2x32xf32>
    %15 = vector.shape_cast %14 : vector<2x32xf32> to vector<2x1x32xf32>
    %16 = vector.broadcast %15 : vector<2x1x32xf32> to vector<2x64x32xf32>
    %17 = arith.mulf %0, %16 : vector<2x64x32xf32>
    %c0_11 = arith.constant 0 : index
    %c0_12 = arith.constant 0 : index
    %c0_13 = arith.constant 0 : index
    %18 = vector.load %arg4[%c0_11, %c0_12, %c0_13] : memref<2x64x32xf32, #tpu.memory_space<vmem>>, vector<2x64x32xf32>
    tpu.vector_store %arg4[%c0_11, %c0_12, %c0_13], %17 {strides = array<i32>} : memref<2x64x32xf32, #tpu.memory_space<vmem>>, vector<2x64x32xf32>,
    return
  }
  func.func @transform_0(%arg0: i32) -> (i32, i32, i32) {
    %c0_i32 = arith.constant 0 : i32
    %c0_i32_0 = arith.constant 0 : i32
    %c0_i32_1 = arith.constant 0 : i32
    return %arg0, %c0_i32, %c0_i32_0 : i32, i32, i32
  }
  func.func @transform_1(%arg0: i32) -> (i32, i32) {
    %c0_i32 = arith.constant 0 : i32
    %c0_i32_0 = arith.constant 0 : i32
    %c0_i32_1 = arith.constant 0 : i32
    return %c0_i32, %c0_i32_0 : i32, i32
  }
  func.func @transform_2(%arg0: i32) -> (i32, i32) {
    %c0_i32 = arith.constant 0 : i32
    %c0_i32_0 = arith.constant 0 : i32
    %c0_i32_1 = arith.constant 0 : i32
    return %c0_i32, %c0_i32_0 : i32, i32
  }
  func.func @transform_3(%arg0: i32) -> (i32, i32, i32) {
    %c0_i32 = arith.constant 0 : i32
    %c0_i32_0 = arith.constant 0 : i32
    %c0_i32_1 = arith.constant 0 : i32
    return %arg0, %c0_i32, %c0_i32_0 : i32, i32, i32
  }
}

</mosaic_0001>

<llo_original>
// kernel: tpu_custom_call.1
$region0: #{tpu_custom_call.1}
  #allocation0 [shape = 'u32[]', space=smem, size = 0x4, offset = 0x4, fixed_abs, tag = 'smem constant byte address 0x4 - core index']
  #allocation1 [shape = 'u32[72,128]{1,0:T(1,128)}', space=vmem, size = 0x9000, scoped, tag = 'internal scratch']
  %s0 = inlined_call_operand.vmem [shape: f32[2,64,32], index: 0, kind: input, shape index: {}]
  %s1 = inlined_call_operand.vmem [shape: f32[32,2], index: 1, kind: input, shape index: {}]
  %s2 = inlined_call_operand.vmem [shape: f32[2,32], index: 2, kind: input, shape index: {}]
  %s3 = inlined_call_operand.vmem [shape: f32[2,64,32], index: 3, kind: output, shape index: {}]
  %s4 = sld [smem:[#allocation0]]
  $region22: #{tpu_custom_call.1} parent=0
    _
  %s6 = ssub.s32 1, %s4
  %s7 = scalar_select 0, %s6, %s4
  // Predicated region
  $region2: #{tpu_custom_call.1} parent=0 // pred_check
    _
  $region3: #{tpu_custom_call.1} parent=0 // pred_check_branch
    %9 = sbr.rel (0) target = $region5
  $region4: #{tpu_custom_call.1} parent=0 // pred_region
    _
  $region5: #{tpu_custom_call.1} parent=0 // pred_fallthru
    _
  // Predicated region
  $region6: #{tpu_custom_call.1} parent=0 // pred_check
    _
  $region7: #{tpu_custom_call.1} parent=0 // pred_check_branch
    %11 = sbr.rel (0) target = $region9
  $region8: #{tpu_custom_call.1} parent=0 // pred_region
    _
  $region9: #{tpu_custom_call.1} parent=0 // pred_fallthru
    _
  // Predicated region
  $region10: #{tpu_custom_call.1} parent=0 // pred_check
    _
  $region11: #{tpu_custom_call.1} parent=0 // pred_check_branch
    %13 = sbr.rel (0) target = $region13
  $region12: #{tpu_custom_call.1} parent=0 // pred_region
    _
  $region13: #{tpu_custom_call.1} parent=0 // pred_fallthru
    _
  %v14 = vld [vmem:[%s0] sm:$0xff]
  %v15 = vld [vmem:[%s0 + $0x8] sm:$0xff]
  %v16 = vld [vmem:[%s0 + $0x10] sm:$0xff]
  %v17 = vld [vmem:[%s0 + $0x18] sm:$0xff]
  %v18 = vld [vmem:[%s0 + $0x20] sm:$0xff]
  %v19 = vld [vmem:[%s0 + $0x28] sm:$0xff]
  %v20 = vld [vmem:[%s0 + $0x30] sm:$0xff]
  %v21 = vld [vmem:[%s0 + $0x38] sm:$0xff]
  %v22 = vld [vmem:[%s0 + $0x40] sm:$0xff]
  %v23 = vld [vmem:[%s0 + $0x48] sm:$0xff]
  %v24 = vld [vmem:[%s0 + $0x50] sm:$0xff]
  %v25 = vld [vmem:[%s0 + $0x58] sm:$0xff]
  %v26 = vld [vmem:[%s0 + $0x60] sm:$0xff]
  %v27 = vld [vmem:[%s0 + $0x68] sm:$0xff]
  %v28 = vld [vmem:[%s0 + $0x70] sm:$0xff]
  %v29 = vld [vmem:[%s0 + $0x78] sm:$0xff]
  %vm30 = vcmask 261120
  %v31 = vsel %vm30, %v14, 0.0
  %v32 = vsel %vm30, %v15, 0.0
  %v33 = vadd.f32 %v31, %v32
  %v34 = vsel %vm30, %v16, 0.0
  %v35 = vadd.f32 %v33, %v34
  %v36 = vsel %vm30, %v17, 0.0
  %v37 = vadd.f32 %v35, %v36
  %v38 = vsel %vm30, %v18, 0.0
  %v39 = vadd.f32 %v37, %v38
  %v40 = vsel %vm30, %v19, 0.0
  %v41 = vadd.f32 %v39, %v40
  %v42 = vsel %vm30, %v20, 0.0
  %v43 = vadd.f32 %v41, %v42
  %v44 = vsel %vm30, %v21, 0.0
  %v45 = vadd.f32 %v43, %v44
  %v46 = vrot.slane %v45, 4
  %v47 = vadd.f32 %v45, %v46
  %v48 = vrot.slane %v47, 2
  %v49 = vadd.f32 %v47, %v48
  %v50 = vrot.slane %v49, 1
  %v51 = vadd.f32 %v49, %v50
  %v52 = vsel %vm30, %v22, 0.0
  %v53 = vsel %vm30, %v23, 0.0
  %v54 = vadd.f32 %v52, %v53
  %v55 = vsel %vm30, %v24, 0.0
  %v56 = vadd.f32 %v54, %v55
  %v57 = vsel %vm30, %v25, 0.0
  %v58 = vadd.f32 %v56, %v57
  %v59 = vsel %vm30, %v26, 0.0
  %v60 = vadd.f32 %v58, %v59
  %v61 = vsel %vm30, %v27, 0.0
  %v62 = vadd.f32 %v60, %v61
  %v63 = vsel %vm30, %v28, 0.0
  %v64 = vadd.f32 %v62, %v63
  %v65 = vsel %vm30, %v29, 0.0
  %v66 = vadd.f32 %v64, %v65
  %v67 = vrot.slane %v66, 4
  %v68 = vadd.f32 %v66, %v67
  %v69 = vrot.slane %v68, 2
  %v70 = vadd.f32 %v68, %v69
  %v71 = vrot.slane %v70, 1
  %v72 = vadd.f32 %v70, %v71
  %v73 = vmul.f32 %v51, 0.015625
  %v74 = vmul.f32 %v72, 0.015625
  %v75 = vld [vmem:[%s1] sm:$0xff]
  %v76 = vld [vmem:[%s1 + $0x8] sm:$0xff]
  %v77 = vld [vmem:[%s1 + $0x10] sm:$0xff]
  %v78 = vld [vmem:[%s1 + $0x18] sm:$0xff]
  %vm81 = vcmask 1041409
  %v82 = vsel %vm81, %v74, %v73
  %v83 = vsel %vm30, %v82, 0
  %85 = vmatpush.msra.mxu0 0.0
  %86 = vmatpush.msra.mxu0 0.0
  %87 = vmatpush.msra.mxu0 0.0
  %88 = vmatpush.msra.mxu0 0.0
  %89 = vmatpush.msra.mxu0 0.0
  %90 = vmatpush.msra.mxu0 0.0
  %91 = vmatpush.msra.mxu0 0.0
  %92 = vmatpush.msra.mxu0 0.0
  %93 = vmatpush.msra.mxu0 0.0
  %94 = vmatpush.msra.mxu0 0.0
  %95 = vmatpush.msra.mxu0 0.0
  %96 = vmatpush.msra.mxu0 0.0
  %97 = vmatpush.msra.mxu0 %v78
  %98 = vmatpush.msra.mxu0 %v77
  %99 = vmatpush.msra.mxu0 %v76
  %100 = vmatpush.msra.mxu0 %v75
  %101 = vmatmul.f32.gmra.mxu0 %v83
  %v102 = vpop.f32.mrf.mxu0
  %v103 = vadd.f32 0.0, %v102
  %104 = vdwg.mxu0
  %v105 = vmax.f32 %v103, 0.0
  %v106 = vld [vmem:[%s2] sm:$0x3]
  %vm107 = vcmask 15360
  %v109 = vsel %vm107, %v105, 0
  %vm111 = vcmask 1041408
  %v113 = vsel %vm111, %v106, 0
  %115 = vmatpush.msra.mxu0 0.0
  %116 = vmatpush.msra.mxu0 0.0
  %117 = vmatpush.msra.mxu0 0.0
  %118 = vmatpush.msra.mxu0 0.0
  %119 = vmatpush.msra.mxu0 0.0
  %120 = vmatpush.msra.mxu0 0.0
  %121 = vmatpush.msra.mxu0 0.0
  %122 = vmatpush.msra.mxu0 0.0
  %123 = vmatpush.msra.mxu0 0.0
  %124 = vmatpush.msra.mxu0 0.0
  %125 = vmatpush.msra.mxu0 0.0
  %126 = vmatpush.msra.mxu0 0.0
  %127 = vmatpush.msra.mxu0 0.0
  %128 = vmatpush.msra.mxu0 0.0
  %129 = vmatpush.msra.mxu0 0.0
  %130 = vmatpush.msra.mxu0 %v113
  %131 = vmatmul.f32.gmra.mxu0 %v109
  %v132 = vpop.f32.mrf.mxu0
  %v133 = vadd.f32 0.0, %v132
  %134 = vdwg.mxu0
  %v135 = vxor.u32 %v133, 2147483648
  %v136 = vmul.f32 %v135, 1.442695
  %v137 = vpow.pop %v136
  %v138 = vadd.f32 %v137, 1.0
  %v139 = vrcp.pop %v138
  %v140 = vmul.f32 %v138, %v139
  %v141 = vsub.f32 1.0, %v140
  %v142 = vmul.f32 %v139, %v141
  %v143 = vadd.f32 %v139, %v142
  %vm144 = vweird.f32 %v138
  %vm145 = vweird.f32 %v139
  %vm146 = vmor %vm144, %vm145
  %v147 = vsel %vm146, %v139, %v143
  %v148 = vand.u32 2147483647, %v138
  %vm149 = vcmp.eq.f32.partialorder %v148, 8.507059e+37
  %v150 = vand.u32 %v138, 2147483648
  %v151 = vor.u32 1.1754944e-38, %v150
  %v152 = vsel %vm149, %v151, %v147
  %v153 = vmul.f32 1.0, %v152
  %v155 = vrot.slane %v153, 1
  %v156 = vperm.slane %v153, 0
  %v157 = vperm.slane %v155, 0
  %v160 = vmul.f32 %v14, %v156
  %v161 = vmul.f32 %v15, %v156
  %v162 = vmul.f32 %v16, %v156
  %v163 = vmul.f32 %v17, %v156
  %v164 = vmul.f32 %v18, %v156
  %v165 = vmul.f32 %v19, %v156
  %v166 = vmul.f32 %v20, %v156
  %v167 = vmul.f32 %v21, %v156
  %v168 = vmul.f32 %v22, %v157
  %v169 = vmul.f32 %v23, %v157
  %v170 = vmul.f32 %v24, %v157
  %v171 = vmul.f32 %v25, %v157
  %v172 = vmul.f32 %v26, %v157
  %v173 = vmul.f32 %v27, %v157
  %v174 = vmul.f32 %v28, %v157
  %v175 = vmul.f32 %v29, %v157
  %176 = vst.msk [vmem:[%s3] sm:$0xff] %vm30, %v160
  %177 = vst.msk [vmem:[%s3 + $0x8] sm:$0xff] %vm30, %v161
  %178 = vst.msk [vmem:[%s3 + $0x10] sm:$0xff] %vm30, %v162
  %179 = vst.msk [vmem:[%s3 + $0x18] sm:$0xff] %vm30, %v163
  %180 = vst.msk [vmem:[%s3 + $0x20] sm:$0xff] %vm30, %v164
  %181 = vst.msk [vmem:[%s3 + $0x28] sm:$0xff] %vm30, %v165
  %182 = vst.msk [vmem:[%s3 + $0x30] sm:$0xff] %vm30, %v166
  %183 = vst.msk [vmem:[%s3 + $0x38] sm:$0xff] %vm30, %v167
  %184 = vst.msk [vmem:[%s3 + $0x40] sm:$0xff] %vm30, %v168
  %185 = vst.msk [vmem:[%s3 + $0x48] sm:$0xff] %vm30, %v169
  %186 = vst.msk [vmem:[%s3 + $0x50] sm:$0xff] %vm30, %v170
  %187 = vst.msk [vmem:[%s3 + $0x58] sm:$0xff] %vm30, %v171
  %188 = vst.msk [vmem:[%s3 + $0x60] sm:$0xff] %vm30, %v172
  %189 = vst.msk [vmem:[%s3 + $0x68] sm:$0xff] %vm30, %v173
  %190 = vst.msk [vmem:[%s3 + $0x70] sm:$0xff] %vm30, %v174
  %191 = vst.msk [vmem:[%s3 + $0x78] sm:$0xff] %vm30, %v175
  // Predicated region
  $region14: #{tpu_custom_call.1} parent=0 // pred_check
    _
  $region15: #{tpu_custom_call.1} parent=0 // pred_check_branch
    %193 = sbr.rel (0) target = $region17
  $region16: #{tpu_custom_call.1} parent=0 // pred_region
    _
  $region17: #{tpu_custom_call.1} parent=0 // pred_fallthru
    _
  // Predicated region
  $region18: #{tpu_custom_call.1} parent=0 // pred_check
    _
  $region19: #{tpu_custom_call.1} parent=0 // pred_check_branch
    %195 = sbr.rel (0) target = $region21
  $region20: #{tpu_custom_call.1} parent=0 // pred_region
    _
  $region21: #{tpu_custom_call.1} parent=0 // pred_fallthru
    _

</llo_original>
